<compile_context>
chip_gen: v7x
topology: tpu7x:2x2x1
jax: 0.10.0
libtpu: 0.0.40
codegen_flags: <defaults>
</compile_context>

<pallas_src>
import functools

import jax
import jax.numpy as jnp
from jax.experimental import pallas as pl
from jax.experimental.pallas import tpu as pltpu


# ------------------------------ fused kernel -------------------------------

def _conv_module_kernel(utt_ref, rc_ref,
                        w1_ref, b1_ref,
                        wd_ref, bd_ref,
                        w2_ref, b2_ref,
                        utt_out_ref, rc_out_ref,
                        pad_ref, seg_ref,
                        *, UB, RB, B, cs, chunk_length, rcl, U, num_chunks):
    """Fused ConvolutionModule forward on flattened (time*batch, D) rows.

    utt_ref: (U*B, D)   GLU-input utterance rows (channels-last, batch-minor)
    rc_ref:  (R*B, D)   GLU-input right-context rows
    w1_ref:  (D, 2D)    combined pointwise_conv1 weight [Wa | Wgate], bf16
    b1_ref:  (1, 2D)    matching bias, f32
    wd_ref:  (K, D)     depthwise conv weight, time-major, f32
    bd_ref:  (1, D)     f32
    w2_ref:  (D, D)     pointwise_conv2 weight (pre-transposed), bf16
    b2_ref:  (1, D)     f32
    pad_ref: ((cs+U)*B, D)               VMEM scratch: zero cache + GLU'd utt
    seg_ref: (num_chunks, (cs+rcl)*B, D) VMEM scratch: all rc segments
    """
    f32 = jnp.float32
    bf16 = jnp.bfloat16
    D = utt_out_ref.shape[-1]
    K = cs + 1
    csB = cs * B
    rclB = rcl * B

    w1 = w1_ref[...]                           # (D, 2D) bf16
    b1 = b1_ref[...].astype(f32)               # (1, 2D)
    wd = wd_ref[...].astype(f32)               # (K, D)
    bd = bd_ref[...].astype(f32)               # (1, D)
    w2 = w2_ref[...]                           # (D, D) bf16
    b2 = b2_ref[...].astype(f32)               # (1, D)

    # ---- pointwise_conv1 (1x1 conv == matmul) with combined Wa|Wb + GLU.
    # One N=2D matmul per slab; the a/gate split is a tile-aligned lane slice.
    # utt and rc slabs are kept as separate dots (they arrive as separate
    # refs) to avoid a VMEM concat copy; each already has M = T*B rows.
    def conv1_glu(x_ref):
        x = x_ref[...].astype(bf16)
        y = jnp.dot(x, w1, preferred_element_type=f32) + b1      # (M, 2D) f32
        return y[:, :D] * jax.nn.sigmoid(y[:, D:])               # (M, D) f32

    glu_utt = conv1_glu(utt_ref)               # (U*B, D)
    glu_rc = conv1_glu(rc_ref)                 # (R*B, D)

    # ---- causal zero cache + GLU'd utterance into the padded scratch
    # (flattened rows: padded-time-major, batch-minor).
    pad_ref[0:csB, :] = jnp.zeros((csB, D), f32)
    pad_ref[csB:csB + UB, :] = glu_utt

    # ---- depthwise (grouped) conv on the utterance: valid conv over pad_ref.
    # A time shift of k is a row shift of k*B in the flattened layout, so
    # batches never mix.  K is small and static -> unrolled taps.
    acc_u = jnp.zeros((UB, D), f32)
    for k in range(K):
        acc_u = acc_u + pad_ref[k * B:k * B + UB, :] * wd[k:k + 1, :]
    utt_conv = acc_u + bd                      # (U*B, D)

    # ---- _split_right_context: stage every chunk's (left ctx + rc chunk)
    # segment into one stacked scratch.  All offsets are compile-time row
    # slices of pad_ref / glu_rc.
    for c in range(num_chunks):
        start = (c + 1) * chunk_length if c < num_chunks - 1 else U
        seg_ref[c, 0:csB, :] = pad_ref[start * B:start * B + csB, :]
        seg_ref[c, csB:csB + rclB, :] = glu_rc[c * rclB:(c + 1) * rclB, :]

    # ---- depthwise conv over ALL chunks at once (vectorized tap sweep).
    acc_rc = jnp.zeros((num_chunks, rclB, D), f32)
    for k in range(K):
        acc_rc = acc_rc + seg_ref[:, k * B:k * B + rclB, :] * wd[k:k + 1, :]
    rc_conv = acc_rc.reshape(RB, D) + bd       # (R*B, D), 8-aligned merge

    # ---- DoubleSwish (x * sigmoid(x - 1)) + pointwise_conv2 (matmul),
    # fed directly from registers (no staging scratch).
    def dswish_conv2(x):
        y = (x * jax.nn.sigmoid(x - 1.0)).astype(bf16)
        return jnp.dot(y, w2, preferred_element_type=f32) + b2

    utt_out_ref[...] = dswish_conv2(utt_conv).astype(utt_out_ref.dtype)
    rc_out_ref[...] = dswish_conv2(rc_conv).astype(rc_out_ref.dtype)


# ------------------------------ forward glue -------------------------------

def prepare_params(torch_params):
    """Pre-combine / pre-transpose / pre-cast weights ONCE, outside jit."""
    w1 = torch_params["w1"]                  # (2D, D), torch layout
    D = torch_params["w2"].shape[0]
    return {
        # channels-last: x_row @ w1.T; cols [:D] = a-half, [D:] = gate.
        "w1_t": jnp.asarray(w1.T, jnp.bfloat16),                     # (D, 2D)
        "b1": torch_params["b1"].reshape(1, 2 * D).astype(jnp.float32),
        "wd_t": jnp.asarray(torch_params["wd"].T, jnp.float32),      # (K, D)
        "bd": torch_params["bd"].reshape(1, D).astype(jnp.float32),
        "w2_t": jnp.asarray(torch_params["w2"].T, jnp.bfloat16),     # (D, D)
        "b2": torch_params["b2"].reshape(1, D).astype(jnp.float32),
    }


@functools.partial(jax.jit, static_argnames=("chunk_length", "rcl", "kernel_size"))
def conv_module_forward(utterance, right_context, prepared, *, chunk_length,
                        rcl, kernel_size):
    """Mirror of ConvolutionModule.forward.

    utterance: (U, B, D), right_context: (R, B, D)  ->  same shapes out.
    """
    U, B, D = utterance.shape
    R = right_context.shape[0]
    cs = kernel_size - 1
    assert rcl > 0 and R % rcl == 0, (R, rcl)
    num_chunks = R // rcl
    assert (num_chunks - 1) * chunk_length <= U, (num_chunks, chunk_length, U)

    # FREE row-major reshapes (no transposes, no extra HBM passes).
    utt2 = utterance.reshape(U * B, D)
    rc2 = right_context.reshape(R * B, D)

    kernel = functools.partial(
        _conv_module_kernel, UB=U * B, RB=R * B, B=B, cs=cs,
        chunk_length=chunk_length, rcl=rcl, U=U, num_chunks=num_chunks)

    def full(shape):
        # whole-array block, single grid step -> DMA'd exactly once.
        return pl.BlockSpec(shape, lambda i: (0,) * len(shape))

    out_utt2, out_rc2 = pl.pallas_call(
        kernel,
        out_shape=(jax.ShapeDtypeStruct((U * B, D), utterance.dtype),
                   jax.ShapeDtypeStruct((R * B, D), right_context.dtype)),
        grid=(1,),
        in_specs=[
            full((U * B, D)), full((R * B, D)),
            full((D, 2 * D)), full((1, 2 * D)),          # w1_t, b1
            full((kernel_size, D)), full((1, D)),        # wd_t, bd
            full((D, D)), full((1, D)),                  # w2_t, b2
        ],
        out_specs=(full((U * B, D)), full((R * B, D))),
        scratch_shapes=[
            pltpu.VMEM(((cs + U) * B, D), jnp.float32),              # padded utt
            pltpu.VMEM((num_chunks, (cs + rcl) * B, D), jnp.float32),  # rc segs
        ],
        compiler_params=pltpu.CompilerParams(
            dimension_semantics=("arbitrary",),
            vmem_limit_bytes=32 * 1024 * 1024),
    )(utt2, rc2,
      prepared["w1_t"], prepared["b1"],
      prepared["wd_t"], prepared["bd"],
      prepared["w2_t"], prepared["b2"])

    # FREE reshapes back to the (T, B, D) layout.
    return out_utt2.reshape(U, B, D), out_rc2.reshape(R, B, D)


# --------------------------- pure-JAX reference ----------------------------

def reference_forward(utterance, right_context, p, *, chunk_length, rcl,
                      kernel_size):
    U, B, D = utterance.shape
    R = right_context.shape[0]
    cs = kernel_size - 1
    x = jnp.concatenate([right_context, utterance], axis=0)
    x = jnp.transpose(x, (1, 2, 0))                                 # (B, D, T)
    y = jnp.einsum("od,bdt->bot", p["w1"], x) + p["b1"][None, :, None]
    a, g = y[:, :D], y[:, D:]
    x = a * jax.nn.sigmoid(g)
    utt = x[:, :, R:]
    rc = x[:, :, :R]
    pad_utt = jnp.concatenate([jnp.zeros((B, D, cs), x.dtype), utt], axis=2)

    def dw(z):
        t_out = z.shape[2] - cs
        acc = jnp.zeros((z.shape[0], D, t_out), jnp.float32)
        for k in range(kernel_size):
            acc = acc + z[:, :, k:k + t_out] * p["wd"][None, :, k, None]
        return acc + p["bd"][None, :, None]

    utt_c = dw(pad_utt)
    num_chunks = R // rcl
    pad_utt_tbd = jnp.transpose(pad_utt, (2, 0, 1))
    rc_tbd = jnp.transpose(rc, (2, 0, 1))
    rc_seg = rc_tbd.reshape(num_chunks, rcl, B, D).transpose(0, 2, 1, 3)
    rc_seg = rc_seg.reshape(num_chunks * B, rcl, D)
    intervals = jnp.arange(0, chunk_length * (num_chunks - 1), chunk_length)
    first = jnp.arange(chunk_length, chunk_length + cs)
    idx = intervals[:, None] + first[None, :]
    U_ = cs + U
    idx = jnp.concatenate([idx, jnp.arange(U_ - cs, U_)[None]], axis=0)
    padding = pad_utt_tbd[idx].transpose(0, 2, 1, 3).reshape(num_chunks * B, cs, D)
    pad_rc = jnp.concatenate([padding, rc_seg], axis=1).transpose(0, 2, 1)
    rc_c = dw(pad_rc)
    rc_c = rc_c.reshape(num_chunks, B, D, rcl).transpose(1, 2, 0, 3).reshape(B, D, R)
    x2 = jnp.concatenate([rc_c, utt_c], axis=2)
    x2 = x2 * jax.nn.sigmoid(x2 - 1.0)
    out = jnp.einsum("od,bdt->bot", p["w2"], x2) + p["b2"][None, :, None]
    return (jnp.transpose(out[:, :, R:], (2, 0, 1)),
            jnp.transpose(out[:, :, :R], (2, 0, 1)))


# ---------------------------------- main -----------------------------------

if __name__ == "__main__":
    # Hyper-params: channels=128 keeps the lane axis dense; everything else small.
    chunk_length = 8
    right_context_length = 4
    channels = 128           # D (lane-dense: multiple of 128)
    kernel_size = 5          # cache_size = 4
    num_chunks = 2
    U = num_chunks * chunk_length           # 16
    R = num_chunks * right_context_length   # 8
    B = 2
    D = channels

    key = jax.random.PRNGKey(0)
    ks = jax.random.split(key, 8)
    torch_params = {
        # ScaledConv1d(channels, 2*channels, k=1): torch weight (2D, D, 1)
        "w1": 0.1 * jax.random.normal(ks[0], (2 * D, D), jnp.float32),
        "b1": 0.1 * jax.random.normal(ks[1], (2 * D,), jnp.float32),
        # depthwise ScaledConv1d(channels, channels, K, groups=channels): (D, 1, K)
        "wd": 0.1 * jax.random.normal(ks[2], (D, kernel_size), jnp.float32),
        "bd": 0.1 * jax.random.normal(ks[3], (D,), jnp.float32),
        # ScaledConv1d(channels, channels, k=1, initial_scale=0.25): (D, D, 1)
        "w2": 0.25 * 0.1 * jax.random.normal(ks[4], (D, D), jnp.float32),
        "b2": 0.25 * 0.1 * jax.random.normal(ks[5], (D,), jnp.float32),
    }
    prepared = prepare_params(torch_params)   # hoisted out of the jitted fwd

    utterance = jax.random.normal(ks[6], (U, B, D), jnp.float32)
    right_context = jax.random.normal(ks[7], (R, B, D), jnp.float32)

    utt_out, rc_out = conv_module_forward(
        utterance, right_context, prepared,
        chunk_length=chunk_length, rcl=right_context_length,
        kernel_size=kernel_size)
    jax.block_until_ready((utt_out, rc_out))

    assert utt_out.shape == (U, B, D), utt_out.shape
    assert rc_out.shape == (R, B, D), rc_out.shape

    ref_utt, ref_rc = reference_forward(
        utterance, right_context, torch_params,
        chunk_length=chunk_length, rcl=right_context_length,
        kernel_size=kernel_size)
    # Tolerance accounts for bf16 MXU operands (f32 accumulation) in the kernel.
    assert jnp.allclose(utt_out, ref_utt, rtol=2e-2, atol=2e-2), \
        float(jnp.max(jnp.abs(utt_out - ref_utt)))
    assert jnp.allclose(rc_out, ref_rc, rtol=2e-2, atol=2e-2), \
        float(jnp.max(jnp.abs(rc_out - ref_rc)))

    print("KERNEL_OK")
</pallas_src>

<mosaic_0001>
module attributes {stable_mosaic.version = 11 : i64} {
  func.func @_conv_module_kernel(%arg0: i32, %arg1: memref<32x128xf32, #tpu.memory_space<vmem>>, %arg2: memref<16x128xf32, #tpu.memory_space<vmem>>, %arg3: memref<128x256xbf16, #tpu.memory_space<vmem>>, %arg4: memref<1x256xf32, #tpu.memory_space<vmem>>, %arg5: memref<5x128xf32, #tpu.memory_space<vmem>>, %arg6: memref<1x128xf32, #tpu.memory_space<vmem>>, %arg7: memref<128x128xbf16, #tpu.memory_space<vmem>>, %arg8: memref<1x128xf32, #tpu.memory_space<vmem>>, %arg9: memref<32x128xf32, #tpu.memory_space<vmem>>, %arg10: memref<16x128xf32, #tpu.memory_space<vmem>>, %arg11: memref<40x128xf32, #tpu.memory_space<vmem>>, %arg12: memref<2x16x128xf32, #tpu.memory_space<vmem>>) attributes {dimension_semantics = [#tpu.dimension_semantics<arbitrary>], iteration_bounds = array<i64: 1>, scalar_prefetch = 0 : i64, scratch_operands = 2 : i64, tpu.core_type = #tpu.core_type<tc>, window_params = [{pipeline_mode = #tpu.pipeline_mode<synchronous>, transform_indices = @transform_0, window_bounds = array<i64: 32, 128>}, {pipeline_mode = #tpu.pipeline_mode<synchronous>, transform_indices = @transform_1, window_bounds = array<i64: 16, 128>}, {pipeline_mode = #tpu.pipeline_mode<synchronous>, transform_indices = @transform_2, window_bounds = array<i64: 128, 256>}, {pipeline_mode = #tpu.pipeline_mode<synchronous>, transform_indices = @transform_3, window_bounds = array<i64: 1, 256>}, {pipeline_mode = #tpu.pipeline_mode<synchronous>, transform_indices = @transform_4, window_bounds = array<i64: 5, 128>}, {pipeline_mode = #tpu.pipeline_mode<synchronous>, transform_indices = @transform_5, window_bounds = array<i64: 1, 128>}, {pipeline_mode = #tpu.pipeline_mode<synchronous>, transform_indices = @transform_6, window_bounds = array<i64: 128, 128>}, {pipeline_mode = #tpu.pipeline_mode<synchronous>, transform_indices = @transform_7, window_bounds = array<i64: 1, 128>}, {pipeline_mode = #tpu.pipeline_mode<synchronous>, transform_indices = @transform_8, window_bounds = array<i64: 32, 128>}, {pipeline_mode = #tpu.pipeline_mode<synchronous>, transform_indices = @transform_9, window_bounds = array<i64: 16, 128>}]} {
    %c0 = arith.constant 0 : index
    %c0_0 = arith.constant 0 : index
    %0 = vector.load %arg3[%c0, %c0_0] : memref<128x256xbf16, #tpu.memory_space<vmem>>, vector<128x256xbf16>
    %c0_1 = arith.constant 0 : index
    %c0_2 = arith.constant 0 : index
    %1 = vector.load %arg4[%c0_1, %c0_2] : memref<1x256xf32, #tpu.memory_space<vmem>>, vector<1x256xf32>
    %c0_3 = arith.constant 0 : index
    %c0_4 = arith.constant 0 : index
    %2 = vector.load %arg5[%c0_3, %c0_4] : memref<5x128xf32, #tpu.memory_space<vmem>>, vector<5x128xf32>
    %c0_5 = arith.constant 0 : index
    %c0_6 = arith.constant 0 : index
    %3 = vector.load %arg6[%c0_5, %c0_6] : memref<1x128xf32, #tpu.memory_space<vmem>>, vector<1x128xf32>
    %c0_7 = arith.constant 0 : index
    %c0_8 = arith.constant 0 : index
    %4 = vector.load %arg7[%c0_7, %c0_8] : memref<128x128xbf16, #tpu.memory_space<vmem>>, vector<128x128xbf16>
    %c0_9 = arith.constant 0 : index
    %c0_10 = arith.constant 0 : index
    %5 = vector.load %arg8[%c0_9, %c0_10] : memref<1x128xf32, #tpu.memory_space<vmem>>, vector<1x128xf32>
    %c0_11 = arith.constant 0 : index
    %c0_12 = arith.constant 0 : index
    %6 = vector.load %arg1[%c0_11, %c0_12] : memref<32x128xf32, #tpu.memory_space<vmem>>, vector<32x128xf32>
    %7 = arith.truncf %6 : vector<32x128xf32> to vector<32x128xbf16>
    %cst = arith.constant dense<0.000000e+00> : vector<32x256xf32>
    %8 = tpu.matmul %7, %0, %cst {dimension_numbers = #tpu.dot_dimension_numbers<[1], [0], [0], [1], [0, 0, 1, 1], [], []>} : vector<32x128xbf16>, vector<128x256xbf16>, vector<32x256xf32> -> vector<32x256xf32>
    %9 = vector.broadcast %1 : vector<1x256xf32> to vector<32x256xf32>
    %10 = arith.addf %8, %9 : vector<32x256xf32>
    %11 = vector.extract_strided_slice %10 {offsets = [0, 0], sizes = [32, 128], strides = [1, 1]} : vector<32x256xf32> to vector<32x128xf32>
    %12 = vector.extract_strided_slice %10 {offsets = [0, 128], sizes = [32, 128], strides = [1, 1]} : vector<32x256xf32> to vector<32x128xf32>
    %13 = arith.negf %12 : vector<32x128xf32>
    %14 = math.exp %13 : vector<32x128xf32>
    %cst_13 = arith.constant 1.000000e+00 : f32
    %15 = vector.broadcast %cst_13 : f32 to vector<32x128xf32>
    %16 = arith.addf %15, %14 : vector<32x128xf32>
    %17 = arith.divf %15, %16 : vector<32x128xf32>
    %18 = arith.mulf %11, %17 : vector<32x128xf32>
    %c0_14 = arith.constant 0 : index
    %c0_15 = arith.constant 0 : index
    %19 = vector.load %arg2[%c0_14, %c0_15] : memref<16x128xf32, #tpu.memory_space<vmem>>, vector<16x128xf32>
    %20 = arith.truncf %19 : vector<16x128xf32> to vector<16x128xbf16>
    %cst_16 = arith.constant dense<0.000000e+00> : vector<16x256xf32>
    %21 = tpu.matmul %20, %0, %cst_16 {dimension_numbers = #tpu.dot_dimension_numbers<[1], [0], [0], [1], [0, 0, 1, 1], [], []>} : vector<16x128xbf16>, vector<128x256xbf16>, vector<16x256xf32> -> vector<16x256xf32>
    %22 = vector.broadcast %1 : vector<1x256xf32> to vector<16x256xf32>
    %23 = arith.addf %21, %22 : vector<16x256xf32>
    %24 = vector.extract_strided_slice %23 {offsets = [0, 0], sizes = [16, 128], strides = [1, 1]} : vector<16x256xf32> to vector<16x128xf32>
    %25 = vector.extract_strided_slice %23 {offsets = [0, 128], sizes = [16, 128], strides = [1, 1]} : vector<16x256xf32> to vector<16x128xf32>
    %26 = arith.negf %25 : vector<16x128xf32>
    %27 = math.exp %26 : vector<16x128xf32>
    %cst_17 = arith.constant 1.000000e+00 : f32
    %28 = vector.broadcast %cst_17 : f32 to vector<16x128xf32>
    %29 = arith.addf %28, %27 : vector<16x128xf32>
    %30 = arith.divf %28, %29 : vector<16x128xf32>
    %31 = arith.mulf %24, %30 : vector<16x128xf32>
    %cst_18 = arith.constant 0.000000e+00 : f32
    %32 = vector.broadcast %cst_18 : f32 to vector<8x128xf32>
    %c0_19 = arith.constant 0 : index
    %c0_20 = arith.constant 0 : index
    %33 = vector.load %arg11[%c0_19, %c0_20] : memref<40x128xf32, #tpu.memory_space<vmem>>, vector<8x128xf32>
    tpu.vector_store %arg11[%c0_19, %c0_20], %32 {strides = array<i32>} : memref<40x128xf32, #tpu.memory_space<vmem>>, vector<8x128xf32>,
    %c8 = arith.constant 8 : index
    %c0_21 = arith.constant 0 : index
    %34 = vector.load %arg11[%c8, %c0_21] : memref<40x128xf32, #tpu.memory_space<vmem>>, vector<32x128xf32>
    tpu.vector_store %arg11[%c8, %c0_21], %18 {strides = array<i32>} : memref<40x128xf32, #tpu.memory_space<vmem>>, vector<32x128xf32>,
    %cst_22 = arith.constant 0.000000e+00 : f32
    %35 = vector.broadcast %cst_22 : f32 to vector<32x128xf32>
    %c0_23 = arith.constant 0 : index
    %c0_24 = arith.constant 0 : index
    %36 = vector.load %arg11[%c0_23, %c0_24] : memref<40x128xf32, #tpu.memory_space<vmem>>, vector<32x128xf32>
    %37 = vector.extract_strided_slice %2 {offsets = [0, 0], sizes = [1, 128], strides = [1, 1]} : vector<5x128xf32> to vector<1x128xf32>
    %38 = vector.broadcast %37 : vector<1x128xf32> to vector<32x128xf32>
    %39 = arith.mulf %36, %38 : vector<32x128xf32>
    %40 = arith.addf %35, %39 : vector<32x128xf32>
    %c2 = arith.constant 2 : index
    %c0_25 = arith.constant 0 : index
    %41 = vector.load %arg11[%c2, %c0_25] : memref<40x128xf32, #tpu.memory_space<vmem>>, vector<32x128xf32>
    %42 = vector.extract_strided_slice %2 {offsets = [1, 0], sizes = [1, 128], strides = [1, 1]} : vector<5x128xf32> to vector<1x128xf32>
    %43 = vector.broadcast %42 : vector<1x128xf32> to vector<32x128xf32>
    %44 = arith.mulf %41, %43 : vector<32x128xf32>
    %45 = arith.addf %40, %44 : vector<32x128xf32>
    %c4 = arith.constant 4 : index
    %c0_26 = arith.constant 0 : index
    %46 = vector.load %arg11[%c4, %c0_26] : memref<40x128xf32, #tpu.memory_space<vmem>>, vector<32x128xf32>
    %47 = vector.extract_strided_slice %2 {offsets = [2, 0], sizes = [1, 128], strides = [1, 1]} : vector<5x128xf32> to vector<1x128xf32>
    %48 = vector.broadcast %47 : vector<1x128xf32> to vector<32x128xf32>
    %49 = arith.mulf %46, %48 : vector<32x128xf32>
    %50 = arith.addf %45, %49 : vector<32x128xf32>
    %c6 = arith.constant 6 : index
    %c0_27 = arith.constant 0 : index
    %51 = vector.load %arg11[%c6, %c0_27] : memref<40x128xf32, #tpu.memory_space<vmem>>, vector<32x128xf32>
    %52 = vector.extract_strided_slice %2 {offsets = [3, 0], sizes = [1, 128], strides = [1, 1]} : vector<5x128xf32> to vector<1x128xf32>
    %53 = vector.broadcast %52 : vector<1x128xf32> to vector<32x128xf32>
    %54 = arith.mulf %51, %53 : vector<32x128xf32>
    %55 = arith.addf %50, %54 : vector<32x128xf32>
    %c8_28 = arith.constant 8 : index
    %c0_29 = arith.constant 0 : index
    %56 = vector.load %arg11[%c8_28, %c0_29] : memref<40x128xf32, #tpu.memory_space<vmem>>, vector<32x128xf32>
    %57 = vector.extract_strided_slice %2 {offsets = [4, 0], sizes = [1, 128], strides = [1, 1]} : vector<5x128xf32> to vector<1x128xf32>
    %58 = vector.broadcast %57 : vector<1x128xf32> to vector<32x128xf32>
    %59 = arith.mulf %56, %58 : vector<32x128xf32>
    %60 = arith.addf %55, %59 : vector<32x128xf32>
    %61 = vector.broadcast %3 : vector<1x128xf32> to vector<32x128xf32>
    %62 = arith.addf %60, %61 : vector<32x128xf32>
    %c16 = arith.constant 16 : index
    %c0_30 = arith.constant 0 : index
    %63 = vector.load %arg11[%c16, %c0_30] : memref<40x128xf32, #tpu.memory_space<vmem>>, vector<8x128xf32>
    %c0_31 = arith.constant 0 : index
    %c0_32 = arith.constant 0 : index
    %c0_33 = arith.constant 0 : index
    %64 = vector.load %arg12[%c0_31, %c0_32, %c0_33] : memref<2x16x128xf32, #tpu.memory_space<vmem>>, vector<1x8x128xf32>
    %65 = vector.shape_cast %64 : vector<1x8x128xf32> to vector<8x128xf32>
    %66 = vector.shape_cast %63 : vector<8x128xf32> to vector<1x8x128xf32>
    tpu.vector_store %arg12[%c0_31, %c0_32, %c0_33], %66 {strides = array<i32>} : memref<2x16x128xf32, #tpu.memory_space<vmem>>, vector<1x8x128xf32>,
    %67 = vector.extract_strided_slice %31 {offsets = [0, 0], sizes = [8, 128], strides = [1, 1]} : vector<16x128xf32> to vector<8x128xf32>
    %c0_34 = arith.constant 0 : index
    %c8_35 = arith.constant 8 : index
    %c0_36 = arith.constant 0 : index
    %68 = vector.load %arg12[%c0_34, %c8_35, %c0_36] : memref<2x16x128xf32, #tpu.memory_space<vmem>>, vector<1x8x128xf32>
    %69 = vector.shape_cast %68 : vector<1x8x128xf32> to vector<8x128xf32>
    %70 = vector.shape_cast %67 : vector<8x128xf32> to vector<1x8x128xf32>
    tpu.vector_store %arg12[%c0_34, %c8_35, %c0_36], %70 {strides = array<i32>} : memref<2x16x128xf32, #tpu.memory_space<vmem>>, vector<1x8x128xf32>,
    %c32 = arith.constant 32 : index
    %c0_37 = arith.constant 0 : index
    %71 = vector.load %arg11[%c32, %c0_37] : memref<40x128xf32, #tpu.memory_space<vmem>>, vector<8x128xf32>
    %c1 = arith.constant 1 : index
    %c0_38 = arith.constant 0 : index
    %c0_39 = arith.constant 0 : index
    %72 = vector.load %arg12[%c1, %c0_38, %c0_39] : memref<2x16x128xf32, #tpu.memory_space<vmem>>, vector<1x8x128xf32>
    %73 = vector.shape_cast %72 : vector<1x8x128xf32> to vector<8x128xf32>
    %74 = vector.shape_cast %71 : vector<8x128xf32> to vector<1x8x128xf32>
    tpu.vector_store %arg12[%c1, %c0_38, %c0_39], %74 {strides = array<i32>} : memref<2x16x128xf32, #tpu.memory_space<vmem>>, vector<1x8x128xf32>,
    %75 = vector.extract_strided_slice %31 {offsets = [8, 0], sizes = [8, 128], strides = [1, 1]} : vector<16x128xf32> to vector<8x128xf32>
    %c1_40 = arith.constant 1 : index
    %c8_41 = arith.constant 8 : index
    %c0_42 = arith.constant 0 : index
    %76 = vector.load %arg12[%c1_40, %c8_41, %c0_42] : memref<2x16x128xf32, #tpu.memory_space<vmem>>, vector<1x8x128xf32>
    %77 = vector.shape_cast %76 : vector<1x8x128xf32> to vector<8x128xf32>
    %78 = vector.shape_cast %75 : vector<8x128xf32> to vector<1x8x128xf32>
    tpu.vector_store %arg12[%c1_40, %c8_41, %c0_42], %78 {strides = array<i32>} : memref<2x16x128xf32, #tpu.memory_space<vmem>>, vector<1x8x128xf32>,
    %cst_43 = arith.constant 0.000000e+00 : f32
    %79 = vector.broadcast %cst_43 : f32 to vector<2x8x128xf32>
    %c0_44 = arith.constant 0 : index
    %c0_45 = arith.constant 0 : index
    %c0_46 = arith.constant 0 : index
    %80 = vector.load %arg12[%c0_44, %c0_45, %c0_46] : memref<2x16x128xf32, #tpu.memory_space<vmem>>, vector<2x8x128xf32>
    %81 = vector.extract_strided_slice %2 {offsets = [0, 0], sizes = [1, 128], strides = [1, 1]} : vector<5x128xf32> to vector<1x128xf32>
    %82 = vector.shape_cast %81 : vector<1x128xf32> to vector<1x1x128xf32>
    %83 = vector.broadcast %82 : vector<1x1x128xf32> to vector<2x8x128xf32>
    %84 = arith.mulf %80, %83 : vector<2x8x128xf32>
    %85 = arith.addf %79, %84 : vector<2x8x128xf32>
    %c0_47 = arith.constant 0 : index
    %c2_48 = arith.constant 2 : index
    %c0_49 = arith.constant 0 : index
    %86 = vector.load %arg12[%c0_47, %c2_48, %c0_49] : memref<2x16x128xf32, #tpu.memory_space<vmem>>, vector<2x8x128xf32>
    %87 = vector.extract_strided_slice %2 {offsets = [1, 0], sizes = [1, 128], strides = [1, 1]} : vector<5x128xf32> to vector<1x128xf32>
    %88 = vector.shape_cast %87 : vector<1x128xf32> to vector<1x1x128xf32>
    %89 = vector.broadcast %88 : vector<1x1x128xf32> to vector<2x8x128xf32>
    %90 = arith.mulf %86, %89 : vector<2x8x128xf32>
    %91 = arith.addf %85, %90 : vector<2x8x128xf32>
    %c0_50 = arith.constant 0 : index
    %c4_51 = arith.constant 4 : index
    %c0_52 = arith.constant 0 : index
    %92 = vector.load %arg12[%c0_50, %c4_51, %c0_52] : memref<2x16x128xf32, #tpu.memory_space<vmem>>, vector<2x8x128xf32>
    %93 = vector.extract_strided_slice %2 {offsets = [2, 0], sizes = [1, 128], strides = [1, 1]} : vector<5x128xf32> to vector<1x128xf32>
    %94 = vector.shape_cast %93 : vector<1x128xf32> to vector<1x1x128xf32>
    %95 = vector.broadcast %94 : vector<1x1x128xf32> to vector<2x8x128xf32>
    %96 = arith.mulf %92, %95 : vector<2x8x128xf32>
    %97 = arith.addf %91, %96 : vector<2x8x128xf32>
    %c0_53 = arith.constant 0 : index
    %c6_54 = arith.constant 6 : index
    %c0_55 = arith.constant 0 : index
    %98 = vector.load %arg12[%c0_53, %c6_54, %c0_55] : memref<2x16x128xf32, #tpu.memory_space<vmem>>, vector<2x8x128xf32>
    %99 = vector.extract_strided_slice %2 {offsets = [3, 0], sizes = [1, 128], strides = [1, 1]} : vector<5x128xf32> to vector<1x128xf32>
    %100 = vector.shape_cast %99 : vector<1x128xf32> to vector<1x1x128xf32>
    %101 = vector.broadcast %100 : vector<1x1x128xf32> to vector<2x8x128xf32>
    %102 = arith.mulf %98, %101 : vector<2x8x128xf32>
    %103 = arith.addf %97, %102 : vector<2x8x128xf32>
    %c0_56 = arith.constant 0 : index
    %c8_57 = arith.constant 8 : index
    %c0_58 = arith.constant 0 : index
    %104 = vector.load %arg12[%c0_56, %c8_57, %c0_58] : memref<2x16x128xf32, #tpu.memory_space<vmem>>, vector<2x8x128xf32>
    %105 = vector.extract_strided_slice %2 {offsets = [4, 0], sizes = [1, 128], strides = [1, 1]} : vector<5x128xf32> to vector<1x128xf32>
    %106 = vector.shape_cast %105 : vector<1x128xf32> to vector<1x1x128xf32>
    %107 = vector.broadcast %106 : vector<1x1x128xf32> to vector<2x8x128xf32>
    %108 = arith.mulf %104, %107 : vector<2x8x128xf32>
    %109 = arith.addf %103, %108 : vector<2x8x128xf32>
    %110 = vector.shape_cast %109 : vector<2x8x128xf32> to vector<16x128xf32>
    %111 = vector.broadcast %3 : vector<1x128xf32> to vector<16x128xf32>
    %112 = arith.addf %110, %111 : vector<16x128xf32>
    %cst_59 = arith.constant 1.000000e+00 : f32
    %113 = vector.broadcast %cst_59 : f32 to vector<32x128xf32>
    %114 = arith.subf %62, %113 : vector<32x128xf32>
    %115 = arith.negf %114 : vector<32x128xf32>
    %116 = math.exp %115 : vector<32x128xf32>
    %cst_60 = arith.constant 1.000000e+00 : f32
    %117 = vector.broadcast %cst_60 : f32 to vector<32x128xf32>
    %118 = arith.addf %117, %116 : vector<32x128xf32>
    %119 = arith.divf %117, %118 : vector<32x128xf32>
    %120 = arith.mulf %62, %119 : vector<32x128xf32>
    %121 = arith.truncf %120 : vector<32x128xf32> to vector<32x128xbf16>
    %cst_61 = arith.constant dense<0.000000e+00> : vector<32x128xf32>
    %122 = tpu.matmul %121, %4, %cst_61 {dimension_numbers = #tpu.dot_dimension_numbers<[1], [0], [0], [1], [0, 0, 1, 1], [], []>} : vector<32x128xbf16>, vector<128x128xbf16>, vector<32x128xf32> -> vector<32x128xf32>
    %123 = vector.broadcast %5 : vector<1x128xf32> to vector<32x128xf32>
    %124 = arith.addf %122, %123 : vector<32x128xf32>
    %c0_62 = arith.constant 0 : index
    %c0_63 = arith.constant 0 : index
    %125 = vector.load %arg9[%c0_62, %c0_63] : memref<32x128xf32, #tpu.memory_space<vmem>>, vector<32x128xf32>
    tpu.vector_store %arg9[%c0_62, %c0_63], %124 {strides = array<i32>} : memref<32x128xf32, #tpu.memory_space<vmem>>, vector<32x128xf32>,
    %cst_64 = arith.constant 1.000000e+00 : f32
    %126 = vector.broadcast %cst_64 : f32 to vector<16x128xf32>
    %127 = arith.subf %112, %126 : vector<16x128xf32>
    %128 = arith.negf %127 : vector<16x128xf32>
    %129 = math.exp %128 : vector<16x128xf32>
    %cst_65 = arith.constant 1.000000e+00 : f32
    %130 = vector.broadcast %cst_65 : f32 to vector<16x128xf32>
    %131 = arith.addf %130, %129 : vector<16x128xf32>
    %132 = arith.divf %130, %131 : vector<16x128xf32>
    %133 = arith.mulf %112, %132 : vector<16x128xf32>
    %134 = arith.truncf %133 : vector<16x128xf32> to vector<16x128xbf16>
    %cst_66 = arith.constant dense<0.000000e+00> : vector<16x128xf32>
    %135 = tpu.matmul %134, %4, %cst_66 {dimension_numbers = #tpu.dot_dimension_numbers<[1], [0], [0], [1], [0, 0, 1, 1], [], []>} : vector<16x128xbf16>, vector<128x128xbf16>, vector<16x128xf32> -> vector<16x128xf32>
    %136 = vector.broadcast %5 : vector<1x128xf32> to vector<16x128xf32>
    %137 = arith.addf %135, %136 : vector<16x128xf32>
    %c0_67 = arith.constant 0 : index
    %c0_68 = arith.constant 0 : index
    %138 = vector.load %arg10[%c0_67, %c0_68] : memref<16x128xf32, #tpu.memory_space<vmem>>, vector<16x128xf32>
    tpu.vector_store %arg10[%c0_67, %c0_68], %137 {strides = array<i32>} : memref<16x128xf32, #tpu.memory_space<vmem>>, vector<16x128xf32>,
    return
  }
  func.func @transform_0(%arg0: i32) -> (i32, i32) {
    %c0_i32 = arith.constant 0 : i32
    %c0_i32_0 = arith.constant 0 : i32
    %c0_i32_1 = arith.constant 0 : i32
    return %c0_i32, %c0_i32_0 : i32, i32
  }
  func.func @transform_1(%arg0: i32) -> (i32, i32) {
    %c0_i32 = arith.constant 0 : i32
    %c0_i32_0 = arith.constant 0 : i32
    %c0_i32_1 = arith.constant 0 : i32
    return %c0_i32, %c0_i32_0 : i32, i32
  }
  func.func @transform_2(%arg0: i32) -> (i32, i32) {
    %c0_i32 = arith.constant 0 : i32
    %c0_i32_0 = arith.constant 0 : i32
    %c0_i32_1 = arith.constant 0 : i32
    return %c0_i32, %c0_i32_0 : i32, i32
  }
  func.func @transform_3(%arg0: i32) -> (i32, i32) {
    %c0_i32 = arith.constant 0 : i32
    %c0_i32_0 = arith.constant 0 : i32
    %c0_i32_1 = arith.constant 0 : i32
    return %c0_i32, %c0_i32_0 : i32, i32
  }
  func.func @transform_4(%arg0: i32) -> (i32, i32) {
    %c0_i32 = arith.constant 0 : i32
    %c0_i32_0 = arith.constant 0 : i32
    %c0_i32_1 = arith.constant 0 : i32
    return %c0_i32, %c0_i32_0 : i32, i32
  }
  func.func @transform_5(%arg0: i32) -> (i32, i32) {
    %c0_i32 = arith.constant 0 : i32
    %c0_i32_0 = arith.constant 0 : i32
    %c0_i32_1 = arith.constant 0 : i32
    return %c0_i32, %c0_i32_0 : i32, i32
  }
  func.func @transform_6(%arg0: i32) -> (i32, i32) {
    %c0_i32 = arith.constant 0 : i32
    %c0_i32_0 = arith.constant 0 : i32
    %c0_i32_1 = arith.constant 0 : i32
    return %c0_i32, %c0_i32_0 : i32, i32
  }
  func.func @transform_7(%arg0: i32) -> (i32, i32) {
    %c0_i32 = arith.constant 0 : i32
    %c0_i32_0 = arith.constant 0 : i32
    %c0_i32_1 = arith.constant 0 : i32
    return %c0_i32, %c0_i32_0 : i32, i32
  }
  func.func @transform_8(%arg0: i32) -> (i32, i32) {
    %c0_i32 = arith.constant 0 : i32
    %c0_i32_0 = arith.constant 0 : i32
    %c0_i32_1 = arith.constant 0 : i32
    return %c0_i32, %c0_i32_0 : i32, i32
  }
  func.func @transform_9(%arg0: i32) -> (i32, i32) {
    %c0_i32 = arith.constant 0 : i32
    %c0_i32_0 = arith.constant 0 : i32
    %c0_i32_1 = arith.constant 0 : i32
    return %c0_i32, %c0_i32_0 : i32, i32
  }
}

</mosaic_0001>

<llo_original>
// kernel: conv_module_forward.1
$region0: #{conv_module_forward.1}
  #allocation0 [shape = 'u32[]', space=smem, size = 0x4, offset = 0x4, fixed_abs, tag = 'smem constant byte address 0x4 - core index']
  #allocation1 [shape = 'u32[144,128]{1,0:T(1,128)}', space=vmem, size = 0x12000, scoped, tag = 'internal scratch']
  #allocation2 [shape = 'f32[40,128]{1,0:T(8,128)}', space=vmem, size = 0x5000, scoped, tag = 'scratch operand']
  #allocation3 [shape = 'f32[2,16,128]{2,1,0:T(8,128)}', space=vmem, size = 0x4000, scoped, tag = 'scratch operand']
  %s0 = inlined_call_operand.hbm [shape: f32[32,128], index: 0, kind: input, shape index: {}]
  %s1 = inlined_call_operand.hbm [shape: f32[16,128], index: 1, kind: input, shape index: {}]
  %s2 = inlined_call_operand.hbm [shape: bf16[128,256], index: 2, kind: input, shape index: {}]
  %s3 = inlined_call_operand.vmem [shape: f32[1,256], index: 3, kind: input, shape index: {}]
  %s4 = inlined_call_operand.vmem [shape: f32[5,128], index: 4, kind: input, shape index: {}]
  %s5 = inlined_call_operand.vmem [shape: f32[1,128], index: 5, kind: input, shape index: {}]
  %s6 = inlined_call_operand.hbm [shape: bf16[128,128], index: 6, kind: input, shape index: {}]
  %s7 = inlined_call_operand.vmem [shape: f32[1,128], index: 7, kind: input, shape index: {}]
  %s8 = inlined_call_operand.hbm [shape: f32[32,128], index: 8, kind: output, shape index: {0}]
  %s9 = inlined_call_operand.hbm [shape: f32[16,128], index: 9, kind: output, shape index: {1}]
  %10 = xla_tuple %s8, %s9
  %s11 = sld [smem:[#allocation0]]
  $region66: #{conv_module_forward.1} parent=0
    _
  %s13 = ssub.s32 1, %s11
  %s14 = scalar_select 0, %s13, %s11
  $region1: #{conv_module_forward.1} parent=0
    #allocation4 [shape = 'u8[16384]{0}', space=vmem, size = 0x4000, scoped, tag = 'input window, operand 0, single buffered']
    #allocation5 [shape = 's32[1]{0}', space=sflag, size = 0x4, scoped, tag = 'scoped memory for conv_module_forward.1']
    #allocation6 [shape = 's32[1]{0}', space=sflag, size = 0x4, scoped, tag = 'scoped memory for conv_module_forward.1']
    #allocation7 [shape = 'u8[8192]{0}', space=vmem, size = 0x2000, scoped, tag = 'input window, operand 1, single buffered']
    #allocation8 [shape = 's32[1]{0}', space=sflag, size = 0x4, scoped, tag = 'scoped memory for conv_module_forward.1']
    #allocation9 [shape = 'u8[65536]{0}', space=vmem, size = 0x10000, scoped, tag = 'input window, operand 2, single buffered']
    #allocation10 [shape = 'u8[32768]{0}', space=vmem, size = 0x8000, scoped, tag = 'input window, operand 6, single buffered']
    #allocation11 [shape = 's32[1]{0}', space=sflag, size = 0x4, scoped, tag = 'scoped memory for conv_module_forward.1']
    #allocation12 [shape = 'u8[16384]{0}', space=vmem, size = 0x4000, scoped, tag = 'output window, operand 0, single buffered']
    #allocation13 [shape = 'u8[8192]{0}', space=vmem, size = 0x2000, scoped, tag = 'output window, operand 1, single buffered']
    #allocation14 [shape = 's32[1]{0}', space=sflag, size = 0x4, scoped, tag = 'scoped memory for conv_module_forward.1']
    %15 = vsyncpa [#allocation5], 0
    %16 = vsyncpa [#allocation8], 0
    %17 = vsyncpa [#allocation11], 0
    %18 = vsyncpa [#allocation6], 0
    %19 = vsyncpa [#allocation14], 0
    // Predicated region
    $region2: #{conv_module_forward.1} parent=1 // pred_check
      _
    $region3: #{conv_module_forward.1} parent=1 // pred_check_branch
      %21 = sbr.rel (0) target = $region5
    $region4: #{conv_module_forward.1} parent=1 // pred_region
      %s23 = ssub.s32 512, 512
      %24 = vsyncadd [#allocation5], %s23
      %s25 = sshll.u32 [#allocation4], 4
      %s26 = int_to_ptr.vmem [resolvable:$true] %s25
      %31 = dma.hbm_to_vmem [thread:$0]  %s0, 512, %s26, [#allocation5], 128, 128, 8
    $region5: #{conv_module_forward.1} parent=1 // pred_fallthru
      _
    // Predicated region
    $region6: #{conv_module_forward.1} parent=1 // pred_check
      _
    $region7: #{conv_module_forward.1} parent=1 // pred_check_branch
      %33 = sbr.rel (0) target = $region9
    $region8: #{conv_module_forward.1} parent=1 // pred_region
      %s35 = ssub.s32 256, 256
      %36 = vsyncadd [#allocation8], %s35
      %s37 = sshll.u32 [#allocation7], 4
      %s38 = int_to_ptr.vmem [resolvable:$true] %s37
      %43 = dma.hbm_to_vmem [thread:$0]  %s1, 256, %s38, [#allocation8], 128, 128, 8
    $region9: #{conv_module_forward.1} parent=1 // pred_fallthru
      _
    // Predicated region
    $region10: #{conv_module_forward.1} parent=1 // pred_check
      _
    $region11: #{conv_module_forward.1} parent=1 // pred_check_branch
      %45 = sbr.rel (0) target = $region13
    $region12: #{conv_module_forward.1} parent=1 // pred_region
      %s47 = ssub.s32 2048, 2048
      %48 = vsyncadd [#allocation8], %s47
      %s49 = sshll.u32 [#allocation9], 4
      %s50 = int_to_ptr.vmem [resolvable:$true] %s49
      %55 = dma.hbm_to_vmem [thread:$0]  %s2, 2048, %s50, [#allocation8], 128, 128, 8
    $region13: #{conv_module_forward.1} parent=1 // pred_fallthru
      _
    // Predicated region
    $region14: #{conv_module_forward.1} parent=1 // pred_check
      _
    $region15: #{conv_module_forward.1} parent=1 // pred_check_branch
      %57 = sbr.rel (0) target = $region17
    $region16: #{conv_module_forward.1} parent=1 // pred_region
      _
    $region17: #{conv_module_forward.1} parent=1 // pred_fallthru
      _
    // Predicated region
    $region18: #{conv_module_forward.1} parent=1 // pred_check
      _
    $region19: #{conv_module_forward.1} parent=1 // pred_check_branch
      %59 = sbr.rel (0) target = $region21
    $region20: #{conv_module_forward.1} parent=1 // pred_region
      _
    $region21: #{conv_module_forward.1} parent=1 // pred_fallthru
      _
    // Predicated region
    $region22: #{conv_module_forward.1} parent=1 // pred_check
      _
    $region23: #{conv_module_forward.1} parent=1 // pred_check_branch
      %61 = sbr.rel (0) target = $region25
    $region24: #{conv_module_forward.1} parent=1 // pred_region
      _
    $region25: #{conv_module_forward.1} parent=1 // pred_fallthru
      _
    // Predicated region
    $region26: #{conv_module_forward.1} parent=1 // pred_check
      _
    $region27: #{conv_module_forward.1} parent=1 // pred_check_branch
      %63 = sbr.rel (0) target = $region29
    $region28: #{conv_module_forward.1} parent=1 // pred_region
      %s65 = ssub.s32 1024, 1024
      %66 = vsyncadd [#allocation11], %s65
      %s67 = sshll.u32 [#allocation10], 4
      %s68 = int_to_ptr.vmem [resolvable:$true] %s67
      %73 = dma.hbm_to_vmem [thread:$0]  %s6, 1024, %s68, [#allocation11], 64, 64, 4
    $region29: #{conv_module_forward.1} parent=1 // pred_fallthru
      _
    // Predicated region
    $region30: #{conv_module_forward.1} parent=1 // pred_check
      _
    $region31: #{conv_module_forward.1} parent=1 // pred_check_branch
      %75 = sbr.rel (0) target = $region33
    $region32: #{conv_module_forward.1} parent=1 // pred_region
      _
    $region33: #{conv_module_forward.1} parent=1 // pred_fallthru
      _
    // Predicated region
    $region34: #{conv_module_forward.1} parent=1 // pred_check
      _
    $region35: #{conv_module_forward.1} parent=1 // pred_check_branch
      %77 = sbr.rel (0) target = $region37
    $region36: #{conv_module_forward.1} parent=1 // pred_region
      %78 = dma.done [#allocation5], 512
    $region37: #{conv_module_forward.1} parent=1 // pred_fallthru
      _
    // Predicated region
    $region38: #{conv_module_forward.1} parent=1 // pred_check
      _
    $region39: #{conv_module_forward.1} parent=1 // pred_check_branch
      %80 = sbr.rel (0) target = $region41
    $region40: #{conv_module_forward.1} parent=1 // pred_region
      %81 = dma.done [#allocation8], 256
    $region41: #{conv_module_forward.1} parent=1 // pred_fallthru
      _
    // Predicated region
    $region42: #{conv_module_forward.1} parent=1 // pred_check
      _
    $region43: #{conv_module_forward.1} parent=1 // pred_check_branch
      %83 = sbr.rel (0) target = $region45
    $region44: #{conv_module_forward.1} parent=1 // pred_region
      %84 = dma.done [#allocation8], 2048
    $region45: #{conv_module_forward.1} parent=1 // pred_fallthru
      _
    // Predicated region
    $region46: #{conv_module_forward.1} parent=1 // pred_check
      _
    $region47: #{conv_module_forward.1} parent=1 // pred_check_branch
      %86 = sbr.rel (0) target = $region49
    $region48: #{conv_module_forward.1} parent=1 // pred_region
      %87 = dma.done [#allocation11], 1024
    $region49: #{conv_module_forward.1} parent=1 // pred_fallthru
      _
    %v89 = vld [vmem:[#allocation9] sm:$0xff]
    %v90 = vld [vmem:[#allocation9 + $0x8] sm:$0xff]
    %v91 = vld [vmem:[#allocation9 + $0x10] sm:$0xff]
    %v92 = vld [vmem:[#allocation9 + $0x18] sm:$0xff]
    %v93 = vld [vmem:[#allocation9 + $0x20] sm:$0xff]
    %v94 = vld [vmem:[#allocation9 + $0x28] sm:$0xff]
    %v95 = vld [vmem:[#allocation9 + $0x30] sm:$0xff]
    %v96 = vld [vmem:[#allocation9 + $0x38] sm:$0xff]
    %v97 = vld [vmem:[#allocation9 + $0x40] sm:$0xff]
    %v98 = vld [vmem:[#allocation9 + $0x48] sm:$0xff]
    %v99 = vld [vmem:[#allocation9 + $0x50] sm:$0xff]
    %v100 = vld [vmem:[#allocation9 + $0x58] sm:$0xff]
    %v101 = vld [vmem:[#allocation9 + $0x60] sm:$0xff]
    %v102 = vld [vmem:[#allocation9 + $0x68] sm:$0xff]
    %v103 = vld [vmem:[#allocation9 + $0x70] sm:$0xff]
    %v104 = vld [vmem:[#allocation9 + $0x78] sm:$0xff]
    %v105 = vld [vmem:[%s3] sm:$0x3]
    %v106 = vld [vmem:[%s4] sm:$0x1f]
    %v107 = vld [vmem:[%s5] sm:$0x1]
    %v108 = vld [vmem:[#allocation10] sm:$0xf]
    %v109 = vld [vmem:[#allocation10 + $0x4] sm:$0xf]
    %v110 = vld [vmem:[#allocation10 + $0x8] sm:$0xf]
    %v111 = vld [vmem:[#allocation10 + $0xc] sm:$0xf]
    %v112 = vld [vmem:[#allocation10 + $0x10] sm:$0xf]
    %v113 = vld [vmem:[#allocation10 + $0x14] sm:$0xf]
    %v114 = vld [vmem:[#allocation10 + $0x18] sm:$0xf]
    %v115 = vld [vmem:[#allocation10 + $0x1c] sm:$0xf]
    %v116 = vld [vmem:[#allocation10 + $0x20] sm:$0xf]
    %v117 = vld [vmem:[#allocation10 + $0x24] sm:$0xf]
    %v118 = vld [vmem:[#allocation10 + $0x28] sm:$0xf]
    %v119 = vld [vmem:[#allocation10 + $0x2c] sm:$0xf]
    %v120 = vld [vmem:[#allocation10 + $0x30] sm:$0xf]
    %v121 = vld [vmem:[#allocation10 + $0x34] sm:$0xf]
    %v122 = vld [vmem:[#allocation10 + $0x38] sm:$0xf]
    %v123 = vld [vmem:[#allocation10 + $0x3c] sm:$0xf]
    %v124 = vld [vmem:[%s7] sm:$0x1]
    %v125 = vld [vmem:[#allocation4] sm:$0xff]
    %v126 = vld [vmem:[#allocation4 + $0x8] sm:$0xff]
    %v127 = vld [vmem:[#allocation4 + $0x10] sm:$0xff]
    %v128 = vld [vmem:[#allocation4 + $0x18] sm:$0xff]
    %v129 = vpack.c.bf16 %v126, %v125
    %v130 = vpack.c.bf16 %v128, %v127
    %v132 = vlaneseq
    %v133 = vshrl.u32 %v132, 7
    %v134 = vsub.s32 0, %v133
    %v135 = vrot.slane %v105, %v134
    %v136 = vlaneseq
    %v137 = vshrl.u32 %v136, 7
    %v138 = vsub.s32 1, %v137
    %v139 = vrot.slane %v105, %v138
    %v158 = vunpack.c.l.b16 %v89
    %v159 = vunpack.c.h.b16 %v89
    %v160 = vunpack.c.l.b16 %v90
    %v161 = vunpack.c.h.b16 %v90
    %v162 = vunpack.c.l.b16 %v91
    %v163 = vunpack.c.h.b16 %v91
    %v164 = vunpack.c.l.b16 %v92
    %v165 = vunpack.c.h.b16 %v92
    %v166 = vunpack.c.l.b16 %v93
    %v167 = vunpack.c.h.b16 %v93
    %v168 = vunpack.c.l.b16 %v94
    %v169 = vunpack.c.h.b16 %v94
    %v170 = vunpack.c.l.b16 %v95
    %v171 = vunpack.c.h.b16 %v95
    %v172 = vunpack.c.l.b16 %v96
    %v173 = vunpack.c.h.b16 %v96
    %v174 = vunpack.c.l.b16 %v97
    %v175 = vunpack.c.h.b16 %v97
    %v176 = vunpack.c.l.b16 %v98
    %v177 = vunpack.c.h.b16 %v98
    %v178 = vunpack.c.l.b16 %v99
    %v179 = vunpack.c.h.b16 %v99
    %v180 = vunpack.c.l.b16 %v100
    %v181 = vunpack.c.h.b16 %v100
    %v182 = vunpack.c.l.b16 %v101
    %v183 = vunpack.c.h.b16 %v101
    %v184 = vunpack.c.l.b16 %v102
    %v185 = vunpack.c.h.b16 %v102
    %v186 = vunpack.c.l.b16 %v103
    %v187 = vunpack.c.h.b16 %v103
    %v188 = vunpack.c.l.b16 %v104
    %v189 = vunpack.c.h.b16 %v104
    %v190 = vpack.c.b16 %v160, %v158
    %v191 = vpack.c.b16 %v161, %v159
    %v192 = vpack.c.b16 %v164, %v162
    %v193 = vpack.c.b16 %v165, %v163
    %v194 = vpack.c.b16 %v168, %v166
    %v195 = vpack.c.b16 %v169, %v167
    %v196 = vpack.c.b16 %v172, %v170
    %v197 = vpack.c.b16 %v173, %v171
    %v198 = vpack.c.b16 %v176, %v174
    %v199 = vpack.c.b16 %v177, %v175
    %v200 = vpack.c.b16 %v180, %v178
    %v201 = vpack.c.b16 %v181, %v179
    %v202 = vpack.c.b16 %v184, %v182
    %v203 = vpack.c.b16 %v185, %v183
    %v204 = vpack.c.b16 %v188, %v186
    %v205 = vpack.c.b16 %v189, %v187
    %222 = vmatprep.subr.bf16.mxu0 %v191
    %223 = vmatpush1.bf16.msra.mxu0 %v190
    %224 = vmatprep.subr.bf16.mxu0 %v193
    %225 = vmatpush1.bf16.msra.mxu0 %v192
    %226 = vmatprep.subr.bf16.mxu0 %v195
    %227 = vmatpush1.bf16.msra.mxu0 %v194
    %228 = vmatprep.subr.bf16.mxu0 %v197
    %229 = vmatpush1.bf16.msra.mxu0 %v196
    %230 = vmatprep.subr.bf16.mxu0 %v199
    %231 = vmatpush1.bf16.msra.mxu0 %v198
    %232 = vmatprep.subr.bf16.mxu0 %v201
    %233 = vmatpush1.bf16.msra.mxu0 %v200
    %234 = vmatprep.subr.bf16.mxu0 %v203
    %235 = vmatpush1.bf16.msra.mxu0 %v202
    %236 = vmatprep.subr.bf16.mxu0 %v205
    %237 = vmatpush1.bf16.msra.mxu0 %v204
    %238 = vmatprep.subr.bf16.mxu0 0
    %239 = vmatpush1.bf16.msra.mxu0 0
    %240 = vmatprep.subr.bf16.mxu0 0
    %241 = vmatpush1.bf16.msra.mxu0 0
    %242 = vmatprep.subr.bf16.mxu0 0
    %243 = vmatpush1.bf16.msra.mxu0 0
    %244 = vmatprep.subr.bf16.mxu0 0
    %245 = vmatpush1.bf16.msra.mxu0 0
    %246 = vmatprep.subr.bf16.mxu0 0
    %247 = vmatpush1.bf16.msra.mxu0 0
    %248 = vmatprep.subr.bf16.mxu0 0
    %249 = vmatpush1.bf16.msra.mxu0 0
    %250 = vmatprep.subr.bf16.mxu0 0
    %251 = vmatpush1.bf16.msra.mxu0 0
    %252 = vmatprep.subr.bf16.mxu0 0
    %253 = vmatpush1.bf16.msra.mxu0 0
    %254 = vmatprep.mubr.bf16.mxu0 0
    %255 = vmatmul.mubr.bf16.gmra.mrb[0].mxu0 %v129
    %v256 = vpop.f32.mrb[0].mxu0
    %v257 = vadd.f32 %v135, %v256
    %v258 = vpop.f32.mrb[0].mxu0
    %v259 = vadd.f32 %v139, %v258
    %v260 = vpop.f32.mrb[0].mxu0
    %v261 = vadd.f32 %v135, %v260
    %v262 = vpop.f32.mrb[0].mxu0
    %v263 = vadd.f32 %v139, %v262
    %264 = vmatprep.mubr.bf16.mxu0 0
    %265 = vmatmul.mubr.bf16.gmra.mrb[0].mxu0 %v130
    %v266 = vpop.f32.mrb[0].mxu0
    %v267 = vadd.f32 %v135, %v266
    %v268 = vpop.f32.mrb[0].mxu0
    %v269 = vadd.f32 %v139, %v268
    %v270 = vpop.f32.mrb[0].mxu0
    %v271 = vadd.f32 %v135, %v270
    %v272 = vpop.f32.mrb[0].mxu0
    %v273 = vadd.f32 %v139, %v272
    %274 = vdwg.mxu0
    %v275 = vxor.u32 %v259, 2147483648
    %v276 = vxor.u32 %v263, 2147483648
    %v277 = vxor.u32 %v269, 2147483648
    %v278 = vxor.u32 %v273, 2147483648
    %v279 = vmul.f32 %v275, 1.442695
    %v280 = vpow.pop %v279
    %v281 = vmul.f32 %v276, 1.442695
    %v282 = vpow.pop %v281
    %v283 = vmul.f32 %v277, 1.442695
    %v284 = vpow.pop %v283
    %v285 = vmul.f32 %v278, 1.442695
    %v286 = vpow.pop %v285
    %v287 = vadd.f32 %v280, 1.0
    %v288 = vadd.f32 %v282, 1.0
    %v289 = vadd.f32 %v284, 1.0
    %v290 = vadd.f32 %v286, 1.0
    %v291 = vrcp.pop %v287
    %v292 = vmul.f32 1.0, %v291
    %v293 = vrcp.pop %v288
    %v294 = vmul.f32 1.0, %v293
    %v295 = vrcp.pop %v289
    %v296 = vmul.f32 1.0, %v295
    %v297 = vrcp.pop %v290
    %v298 = vmul.f32 1.0, %v297
    %v299 = vmul.f32 %v257, %v292
    %v300 = vmul.f32 %v261, %v294
    %v301 = vmul.f32 %v267, %v296
    %v302 = vmul.f32 %v271, %v298
    %v303 = vld [vmem:[#allocation7] sm:$0xff]
    %v304 = vld [vmem:[#allocation7 + $0x8] sm:$0xff]
    %v305 = vpack.c.bf16 %v304, %v303
    %306 = vmatprep.subr.bf16.mxu0 %v191
    %307 = vmatpush1.bf16.msra.mxu0 %v190
    %308 = vmatprep.subr.bf16.mxu0 %v193
    %309 = vmatpush1.bf16.msra.mxu0 %v192
    %310 = vmatprep.subr.bf16.mxu0 %v195
    %311 = vmatpush1.bf16.msra.mxu0 %v194
    %312 = vmatprep.subr.bf16.mxu0 %v197
    %313 = vmatpush1.bf16.msra.mxu0 %v196
    %314 = vmatprep.subr.bf16.mxu0 %v199
    %315 = vmatpush1.bf16.msra.mxu0 %v198
    %316 = vmatprep.subr.bf16.mxu0 %v201
    %317 = vmatpush1.bf16.msra.mxu0 %v200
    %318 = vmatprep.subr.bf16.mxu0 %v203
    %319 = vmatpush1.bf16.msra.mxu0 %v202
    %320 = vmatprep.subr.bf16.mxu0 %v205
    %321 = vmatpush1.bf16.msra.mxu0 %v204
    %322 = vmatprep.subr.bf16.mxu0 0
    %323 = vmatpush1.bf16.msra.mxu0 0
    %324 = vmatprep.subr.bf16.mxu0 0
    %325 = vmatpush1.bf16.msra.mxu0 0
    %326 = vmatprep.subr.bf16.mxu0 0
    %327 = vmatpush1.bf16.msra.mxu0 0
    %328 = vmatprep.subr.bf16.mxu0 0
    %329 = vmatpush1.bf16.msra.mxu0 0
    %330 = vmatprep.subr.bf16.mxu0 0
    %331 = vmatpush1.bf16.msra.mxu0 0
    %332 = vmatprep.subr.bf16.mxu0 0
    %333 = vmatpush1.bf16.msra.mxu0 0
    %334 = vmatprep.subr.bf16.mxu0 0
    %335 = vmatpush1.bf16.msra.mxu0 0
    %336 = vmatprep.subr.bf16.mxu0 0
    %337 = vmatpush1.bf16.msra.mxu0 0
    %338 = vmatprep.mubr.bf16.mxu0 0
    %339 = vmatmul.mubr.bf16.gmra.mrb[0].mxu0 %v305
    %v340 = vpop.f32.mrb[0].mxu0
    %v341 = vadd.f32 %v135, %v340
    %v342 = vpop.f32.mrb[0].mxu0
    %v343 = vadd.f32 %v139, %v342
    %v344 = vpop.f32.mrb[0].mxu0
    %v345 = vadd.f32 %v135, %v344
    %v346 = vpop.f32.mrb[0].mxu0
    %v347 = vadd.f32 %v139, %v346
    %348 = vdwg.mxu0
    %v349 = vxor.u32 %v343, 2147483648
    %v350 = vxor.u32 %v347, 2147483648
    %v351 = vmul.f32 %v349, 1.442695
    %v352 = vpow.pop %v351
    %v353 = vmul.f32 %v350, 1.442695
    %v354 = vpow.pop %v353
    %v355 = vadd.f32 %v352, 1.0
    %v356 = vadd.f32 %v354, 1.0
    %v357 = vrcp.pop %v355
    %v358 = vmul.f32 1.0, %v357
    %v359 = vrcp.pop %v356
    %v360 = vmul.f32 1.0, %v359
    %v361 = vmul.f32 %v341, %v358
    %v362 = vmul.f32 %v345, %v360
    %363 = vst [vmem:[#allocation2] sm:$0xff] 0.0
    %364 = vst [vmem:[#allocation2 + $0x8] sm:$0xff] %v299
    %365 = vst [vmem:[#allocation2 + $0x10] sm:$0xff] %v300
    %366 = vst [vmem:[#allocation2 + $0x18] sm:$0xff] %v301
    %367 = vst [vmem:[#allocation2 + $0x20] sm:$0xff] %v302
    %v368 = vld [vmem:[#allocation2] sm:$0xff]
    %v369 = vld [vmem:[#allocation2 + $0x8] sm:$0xff]
    %v370 = vld [vmem:[#allocation2 + $0x10] sm:$0xff]
    %v371 = vld [vmem:[#allocation2 + $0x18] sm:$0xff]
    %v372 = vlaneseq
    %v373 = vshrl.u32 %v372, 7
    %v374 = vsub.s32 0, %v373
    %v375 = vrot.slane %v106, %v374
    %v376 = vmul.f32 %v368, %v375
    %v377 = vmul.f32 %v369, %v375
    %v378 = vmul.f32 %v370, %v375
    %v379 = vmul.f32 %v371, %v375
    %v380 = vadd.f32 %v376, 0.0
    %v381 = vadd.f32 %v377, 0.0
    %v382 = vadd.f32 %v378, 0.0
    %v383 = vadd.f32 %v379, 0.0
    %v384 = vld [vmem:[#allocation2 + $0x2] sm:$0xff]
    %v385 = vld [vmem:[#allocation2 + $0xa] sm:$0xff]
    %v386 = vld [vmem:[#allocation2 + $0x12] sm:$0xff]
    %v387 = vld [vmem:[#allocation2 + $0x1a] sm:$0xff]
    %v388 = vlaneseq
    %v389 = vshrl.u32 %v388, 7
    %v390 = vsub.s32 1, %v389
    %v391 = vrot.slane %v106, %v390
    %v392 = vmul.f32 %v384, %v391
    %v393 = vmul.f32 %v385, %v391
    %v394 = vmul.f32 %v386, %v391
    %v395 = vmul.f32 %v387, %v391
    %v396 = vadd.f32 %v380, %v392
    %v397 = vadd.f32 %v381, %v393
    %v398 = vadd.f32 %v382, %v394
    %v399 = vadd.f32 %v383, %v395
    %v400 = vld [vmem:[#allocation2 + $0x4] sm:$0xff]
    %v401 = vld [vmem:[#allocation2 + $0xc] sm:$0xff]
    %v402 = vld [vmem:[#allocation2 + $0x14] sm:$0xff]
    %v403 = vld [vmem:[#allocation2 + $0x1c] sm:$0xff]
    %v404 = vlaneseq
    %v405 = vshrl.u32 %v404, 7
    %v406 = vsub.s32 2, %v405
    %v407 = vrot.slane %v106, %v406
    %v408 = vmul.f32 %v400, %v407
    %v409 = vmul.f32 %v401, %v407
    %v410 = vmul.f32 %v402, %v407
    %v411 = vmul.f32 %v403, %v407
    %v412 = vadd.f32 %v396, %v408
    %v413 = vadd.f32 %v397, %v409
    %v414 = vadd.f32 %v398, %v410
    %v415 = vadd.f32 %v399, %v411
    %v416 = vld [vmem:[#allocation2 + $0x6] sm:$0xff]
    %v417 = vld [vmem:[#allocation2 + $0xe] sm:$0xff]
    %v418 = vld [vmem:[#allocation2 + $0x16] sm:$0xff]
    %v419 = vld [vmem:[#allocation2 + $0x1e] sm:$0xff]
    %v420 = vlaneseq
    %v421 = vshrl.u32 %v420, 7
    %v422 = vsub.s32 3, %v421
    %v423 = vrot.slane %v106, %v422
    %v424 = vmul.f32 %v416, %v423
    %v425 = vmul.f32 %v417, %v423
    %v426 = vmul.f32 %v418, %v423
    %v427 = vmul.f32 %v419, %v423
    %v428 = vadd.f32 %v412, %v424
    %v429 = vadd.f32 %v413, %v425
    %v430 = vadd.f32 %v414, %v426
    %v431 = vadd.f32 %v415, %v427
    %v432 = vld [vmem:[#allocation2 + $0x8] sm:$0xff]
    %v433 = vld [vmem:[#allocation2 + $0x10] sm:$0xff]
    %v434 = vld [vmem:[#allocation2 + $0x18] sm:$0xff]
    %v435 = vld [vmem:[#allocation2 + $0x20] sm:$0xff]
    %v436 = vlaneseq
    %v437 = vshrl.u32 %v436, 7
    %v438 = vsub.s32 4, %v437
    %v439 = vrot.slane %v106, %v438
    %v440 = vmul.f32 %v432, %v439
    %v441 = vmul.f32 %v433, %v439
    %v442 = vmul.f32 %v434, %v439
    %v443 = vmul.f32 %v435, %v439
    %v444 = vadd.f32 %v428, %v440
    %v445 = vadd.f32 %v429, %v441
    %v446 = vadd.f32 %v430, %v442
    %v447 = vadd.f32 %v431, %v443
    %v449 = vlaneseq
    %v450 = vshrl.u32 %v449, 7
    %v451 = vsub.s32 0, %v450
    %v452 = vrot.slane %v107, %v451
    %v454 = vadd.f32 %v444, %v452
    %v455 = vadd.f32 %v445, %v452
    %v456 = vadd.f32 %v446, %v452
    %v457 = vadd.f32 %v447, %v452
    %458 = vst [vmem:[#allocation3] sm:$0xff] %v370
    %459 = vst [vmem:[#allocation3 + $0x8] sm:$0xff] %v361
    %v460 = vld [vmem:[#allocation2 + $0x20] sm:$0xff]
    %s461 = scalar_lea.vmem [#allocation3], 16
    %462 = vst [vmem:[%s461] sm:$0xff] %v460
    %463 = vst [vmem:[%s461 + $0x8] sm:$0xff] %v362
    %v464 = vld [vmem:[#allocation3] sm:$0xff]
    %v465 = vld [vmem:[#allocation3 + $0x10] sm:$0xff]
    %v466 = vmul.f32 %v464, %v375
    %v467 = vmul.f32 %v465, %v375
    %v468 = vadd.f32 %v466, 0.0
    %v469 = vadd.f32 %v467, 0.0
    %v470 = vld [vmem:[#allocation3 + $0x2] sm:$0xff]
    %v471 = vld [vmem:[#allocation3 + $0x12] sm:$0xff]
    %v472 = vmul.f32 %v470, %v391
    %v473 = vmul.f32 %v471, %v391
    %v474 = vadd.f32 %v468, %v472
    %v475 = vadd.f32 %v469, %v473
    %v476 = vld [vmem:[#allocation3 + $0x4] sm:$0xff]
    %v477 = vld [vmem:[#allocation3 + $0x14] sm:$0xff]
    %v478 = vmul.f32 %v476, %v407
    %v479 = vmul.f32 %v477, %v407
    %v480 = vadd.f32 %v474, %v478
    %v481 = vadd.f32 %v475, %v479
    %v482 = vld [vmem:[#allocation3 + $0x6] sm:$0xff]
    %v483 = vld [vmem:[#allocation3 + $0x16] sm:$0xff]
    %v484 = vmul.f32 %v482, %v423
    %v485 = vmul.f32 %v483, %v423
    %v486 = vadd.f32 %v480, %v484
    %v487 = vadd.f32 %v481, %v485
    %v488 = vld [vmem:[#allocation3 + $0x8] sm:$0xff]
    %v489 = vld [vmem:[#allocation3 + $0x18] sm:$0xff]
    %v490 = vmul.f32 %v488, %v439
    %v491 = vmul.f32 %v489, %v439
    %v492 = vadd.f32 %v486, %v490
    %v493 = vadd.f32 %v487, %v491
    %v494 = vadd.f32 %v492, %v452
    %v495 = vadd.f32 %v493, %v452
    %v496 = vsub.f32 %v454, 1.0
    %v497 = vsub.f32 %v455, 1.0
    %v498 = vsub.f32 %v456, 1.0
    %v499 = vsub.f32 %v457, 1.0
    %v500 = vxor.u32 %v496, 2147483648
    %v501 = vxor.u32 %v497, 2147483648
    %v502 = vxor.u32 %v498, 2147483648
    %v503 = vxor.u32 %v499, 2147483648
    %v504 = vmul.f32 %v500, 1.442695
    %v505 = vpow.pop %v504
    %v506 = vmul.f32 %v501, 1.442695
    %v507 = vpow.pop %v506
    %v508 = vmul.f32 %v502, 1.442695
    %v509 = vpow.pop %v508
    %v510 = vmul.f32 %v503, 1.442695
    %v511 = vpow.pop %v510
    %v512 = vadd.f32 %v505, 1.0
    %v513 = vadd.f32 %v507, 1.0
    %v514 = vadd.f32 %v509, 1.0
    %v515 = vadd.f32 %v511, 1.0
    %v516 = vrcp.pop %v512
    %v517 = vmul.f32 1.0, %v516
    %v518 = vrcp.pop %v513
    %v519 = vmul.f32 1.0, %v518
    %v520 = vrcp.pop %v514
    %v521 = vmul.f32 1.0, %v520
    %v522 = vrcp.pop %v515
    %v523 = vmul.f32 1.0, %v522
    %v524 = vmul.f32 %v454, %v517
    %v525 = vmul.f32 %v455, %v519
    %v526 = vmul.f32 %v456, %v521
    %v527 = vmul.f32 %v457, %v523
    %v528 = vpack.c.bf16 %v525, %v524
    %v529 = vpack.c.bf16 %v527, %v526
    %v531 = vlaneseq
    %v532 = vshrl.u32 %v531, 7
    %v533 = vsub.s32 0, %v532
    %v534 = vrot.slane %v124, %v533
    %v552 = vunpack.c.l.b16 %v108
    %v553 = vunpack.c.l.b16 %v109
    %v554 = vunpack.c.l.b16 %v110
    %v555 = vunpack.c.l.b16 %v111
    %v556 = vunpack.c.l.b16 %v112
    %v557 = vunpack.c.l.b16 %v113
    %v558 = vunpack.c.l.b16 %v114
    %v559 = vunpack.c.l.b16 %v115
    %v560 = vunpack.c.l.b16 %v116
    %v561 = vunpack.c.l.b16 %v117
    %v562 = vunpack.c.l.b16 %v118
    %v563 = vunpack.c.l.b16 %v119
    %v564 = vunpack.c.l.b16 %v120
    %v565 = vunpack.c.l.b16 %v121
    %v566 = vunpack.c.l.b16 %v122
    %v567 = vunpack.c.l.b16 %v123
    %v568 = vpack.c.b16 %v553, %v552
    %v569 = vpack.c.b16 %v555, %v554
    %v570 = vpack.c.b16 %v557, %v556
    %v571 = vpack.c.b16 %v559, %v558
    %v572 = vpack.c.b16 %v561, %v560
    %v573 = vpack.c.b16 %v563, %v562
    %v574 = vpack.c.b16 %v565, %v564
    %v575 = vpack.c.b16 %v567, %v566
    %584 = vmatprep.subr.bf16.mxu0 0
    %585 = vmatpush1.bf16.msra.mxu0 %v568
    %586 = vmatprep.subr.bf16.mxu0 0
    %587 = vmatpush1.bf16.msra.mxu0 %v569
    %588 = vmatprep.subr.bf16.mxu0 0
    %589 = vmatpush1.bf16.msra.mxu0 %v570
    %590 = vmatprep.subr.bf16.mxu0 0
    %591 = vmatpush1.bf16.msra.mxu0 %v571
    %592 = vmatprep.subr.bf16.mxu0 0
    %593 = vmatpush1.bf16.msra.mxu0 %v572
    %594 = vmatprep.subr.bf16.mxu0 0
    %595 = vmatpush1.bf16.msra.mxu0 %v573
    %596 = vmatprep.subr.bf16.mxu0 0
    %597 = vmatpush1.bf16.msra.mxu0 %v574
    %598 = vmatprep.subr.bf16.mxu0 0
    %599 = vmatpush1.bf16.msra.mxu0 %v575
    %600 = vmatprep.subr.bf16.mxu0 0
    %601 = vmatpush1.bf16.msra.mxu0 0
    %602 = vmatprep.subr.bf16.mxu0 0
    %603 = vmatpush1.bf16.msra.mxu0 0
    %604 = vmatprep.subr.bf16.mxu0 0
    %605 = vmatpush1.bf16.msra.mxu0 0
    %606 = vmatprep.subr.bf16.mxu0 0
    %607 = vmatpush1.bf16.msra.mxu0 0
    %608 = vmatprep.subr.bf16.mxu0 0
    %609 = vmatpush1.bf16.msra.mxu0 0
    %610 = vmatprep.subr.bf16.mxu0 0
    %611 = vmatpush1.bf16.msra.mxu0 0
    %612 = vmatprep.subr.bf16.mxu0 0
    %613 = vmatpush1.bf16.msra.mxu0 0
    %614 = vmatprep.subr.bf16.mxu0 0
    %615 = vmatpush1.bf16.msra.mxu0 0
    %616 = vmatprep.mubr.bf16.mxu0 0
    %617 = vmatmul.mubr.bf16.gmra.mrb[0].mxu0 %v528
    %v618 = vpop.f32.mrb[0].mxu0
    %v619 = vadd.f32 %v534, %v618
    %v620 = vpop.f32.mrb[0].mxu0
    %v621 = vpop.f32.mrb[0].mxu0
    %v622 = vadd.f32 %v534, %v621
    %v623 = vpop.f32.mrb[0].mxu0
    %624 = vmatprep.mubr.bf16.mxu0 0
    %625 = vmatmul.mubr.bf16.gmra.mrb[0].mxu0 %v529
    %v626 = vpop.f32.mrb[0].mxu0
    %v627 = vadd.f32 %v534, %v626
    %v628 = vpop.f32.mrb[0].mxu0
    %v629 = vpop.f32.mrb[0].mxu0
    %v630 = vadd.f32 %v534, %v629
    %v631 = vpop.f32.mrb[0].mxu0
    %632 = vdwg.mxu0
    %633 = vst [vmem:[#allocation12] sm:$0xff] %v619
    %634 = vst [vmem:[#allocation12 + $0x8] sm:$0xff] %v622
    %635 = vst [vmem:[#allocation12 + $0x10] sm:$0xff] %v627
    %636 = vst [vmem:[#allocation12 + $0x18] sm:$0xff] %v630
    %v637 = vsub.f32 %v494, 1.0
    %v638 = vsub.f32 %v495, 1.0
    %v639 = vxor.u32 %v637, 2147483648
    %v640 = vxor.u32 %v638, 2147483648
    %v641 = vmul.f32 %v639, 1.442695
    %v642 = vpow.pop %v641
    %v643 = vmul.f32 %v640, 1.442695
    %v644 = vpow.pop %v643
    %v645 = vadd.f32 %v642, 1.0
    %v646 = vadd.f32 %v644, 1.0
    %v647 = vrcp.pop %v645
    %v648 = vmul.f32 1.0, %v647
    %v649 = vrcp.pop %v646
    %v650 = vmul.f32 1.0, %v649
    %v651 = vmul.f32 %v494, %v648
    %v652 = vmul.f32 %v495, %v650
    %v653 = vpack.c.bf16 %v652, %v651
    %654 = vmatprep.subr.bf16.mxu0 0
    %655 = vmatpush1.bf16.msra.mxu0 %v568
    %656 = vmatprep.subr.bf16.mxu0 0
    %657 = vmatpush1.bf16.msra.mxu0 %v569
    %658 = vmatprep.subr.bf16.mxu0 0
    %659 = vmatpush1.bf16.msra.mxu0 %v570
    %660 = vmatprep.subr.bf16.mxu0 0
    %661 = vmatpush1.bf16.msra.mxu0 %v571
    %662 = vmatprep.subr.bf16.mxu0 0
    %663 = vmatpush1.bf16.msra.mxu0 %v572
    %664 = vmatprep.subr.bf16.mxu0 0
    %665 = vmatpush1.bf16.msra.mxu0 %v573
    %666 = vmatprep.subr.bf16.mxu0 0
    %667 = vmatpush1.bf16.msra.mxu0 %v574
    %668 = vmatprep.subr.bf16.mxu0 0
    %669 = vmatpush1.bf16.msra.mxu0 %v575
    %670 = vmatprep.subr.bf16.mxu0 0
    %671 = vmatpush1.bf16.msra.mxu0 0
    %672 = vmatprep.subr.bf16.mxu0 0
    %673 = vmatpush1.bf16.msra.mxu0 0
    %674 = vmatprep.subr.bf16.mxu0 0
    %675 = vmatpush1.bf16.msra.mxu0 0
    %676 = vmatprep.subr.bf16.mxu0 0
    %677 = vmatpush1.bf16.msra.mxu0 0
    %678 = vmatprep.subr.bf16.mxu0 0
    %679 = vmatpush1.bf16.msra.mxu0 0
    %680 = vmatprep.subr.bf16.mxu0 0
    %681 = vmatpush1.bf16.msra.mxu0 0
    %682 = vmatprep.subr.bf16.mxu0 0
    %683 = vmatpush1.bf16.msra.mxu0 0
    %684 = vmatprep.subr.bf16.mxu0 0
    %685 = vmatpush1.bf16.msra.mxu0 0
    %686 = vmatprep.mubr.bf16.mxu0 0
    %687 = vmatmul.mubr.bf16.gmra.mrb[0].mxu0 %v653
    %v688 = vpop.f32.mrb[0].mxu0
    %v689 = vadd.f32 %v534, %v688
    %v690 = vpop.f32.mrb[0].mxu0
    %v691 = vpop.f32.mrb[0].mxu0
    %v692 = vadd.f32 %v534, %v691
    %v693 = vpop.f32.mrb[0].mxu0
    %694 = vdwg.mxu0
    %695 = vst [vmem:[#allocation13] sm:$0xff] %v689
    %696 = vst [vmem:[#allocation13 + $0x8] sm:$0xff] %v692
    // Predicated region
    $region50: #{conv_module_forward.1} parent=1 // pred_check
      _
    $region51: #{conv_module_forward.1} parent=1 // pred_check_branch
      %698 = sbr.rel (0) target = $region53
    $region52: #{conv_module_forward.1} parent=1 // pred_region
      %s700 = ssub.s32 512, 512
      %701 = vsyncadd [#allocation6], %s700
      %s702 = sshll.u32 [#allocation12], 4
      %s703 = int_to_ptr.vmem [resolvable:$true] %s702
      %708 = dma.vmem_to_hbm [thread:$0]  %s703, 512, %s8, [#allocation6], 128, 128, 8
    $region53: #{conv_module_forward.1} parent=1 // pred_fallthru
      _
    // Predicated region
    $region54: #{conv_module_forward.1} parent=1 // pred_check
      _
    $region55: #{conv_module_forward.1} parent=1 // pred_check_branch
      %710 = sbr.rel (0) target = $region57
    $region56: #{conv_module_forward.1} parent=1 // pred_region
      %s712 = ssub.s32 256, 256
      %713 = vsyncadd [#allocation14], %s712
      %s714 = sshll.u32 [#allocation13], 4
      %s715 = int_to_ptr.vmem [resolvable:$true] %s714
      %720 = dma.vmem_to_hbm [thread:$0]  %s715, 256, %s9, [#allocation14], 128, 128, 8
    $region57: #{conv_module_forward.1} parent=1 // pred_fallthru
      _
    // Predicated region
    $region58: #{conv_module_forward.1} parent=1 // pred_check
      _
    $region59: #{conv_module_forward.1} parent=1 // pred_check_branch
      %722 = sbr.rel (0) target = $region61
    $region60: #{conv_module_forward.1} parent=1 // pred_region
      %723 = dma.done [#allocation6], 512
    $region61: #{conv_module_forward.1} parent=1 // pred_fallthru
      _
    // Predicated region
    $region62: #{conv_module_forward.1} parent=1 // pred_check
      _
    $region63: #{conv_module_forward.1} parent=1 // pred_check_branch
      %725 = sbr.rel (0) target = $region65
    $region64: #{conv_module_forward.1} parent=1 // pred_region
      %726 = dma.done [#allocation14], 256
    $region65: #{conv_module_forward.1} parent=1 // pred_fallthru
      _
    %727 = vsyncpa [#allocation5], 1
    %728 = vsyncpa [#allocation8], 1
    %729 = vsyncpa [#allocation11], 1
    %730 = vsyncpa [#allocation6], 1
    %731 = vsyncpa [#allocation14], 1

</llo_original>
